<compile_context>
chip_gen: v5e
topology: v5e:2x2
jax: 0.10.0
libtpu: 0.0.40
codegen_flags: <defaults>
</compile_context>

<pallas_src>
import functools

import jax
import jax.numpy as jnp
from jax.experimental import pallas as pl
from jax.experimental.pallas import tpu as pltpu


# --------------------------------------------------------------------------
# Hardware query (conservative fallbacks if unavailable).
# --------------------------------------------------------------------------
def _tpu_params():
    """Returns (vmem_capacity_bytes, tensorcores_per_chip)."""
    cap = 64 << 20      # conservative default (v7x per-TC VMEM)
    cores = 1
    try:
        info = pltpu.get_tpu_info()
        cap = int(getattr(info, "vmem_capacity_bytes", cap))
        # v7x: 64 MiB/TC and 2 TCs per chip; v5e/v6e: 128 MiB and 1 TC.
        cores = 2 if cap <= (64 << 20) else 1
        for name in ("num_tensorcores", "tensorcores_per_chip", "num_cores"):
            v = getattr(info, name, None)
            if isinstance(v, int) and v > 0:
                cores = v
                break
    except Exception:
        pass
    return cap, cores


def _round_up(n, m):
    return -(-n // m) * m


# --------------------------------------------------------------------------
# Single-pass kernel: one (TB, C, HW) slab per grid step.
# --------------------------------------------------------------------------
def _nca_kernel(x_ref, w1t_ref, b1_ref, w2t_ref, b2_ref, w3t_ref, b3_ref,
                o_ref, *, inv_hw):
    # ---- statistics: per-(batch, channel) mean and centered std ----------
    # Each use re-reads the input ref so Mosaic streams from the single VMEM
    # input buffer instead of keeping a full upcast copy live across the body.
    s1 = jnp.sum(x_ref[...].astype(jnp.float32), axis=-1)          # (TB, C)
    mean = s1 * inv_hw

    d = x_ref[...].astype(jnp.float32) - mean[:, :, None]          # centered
    var = jnp.sum(d * d, axis=-1) * inv_hw                         # == torch stdv()^2
    std = jnp.sqrt(var)                                            # (TB, C)

    # ---- tiny 1x1-conv gate math on the MXU (off the critical path) ------
    w1t = w1t_ref[...].astype(jnp.float32)                         # (C, Cr)
    w2t = w2t_ref[...].astype(jnp.float32)                         # (C, Cr)
    w3t = w3t_ref[...].astype(jnp.float32)                         # (Cr, C)
    b1 = b1_ref[...].astype(jnp.float32)                           # (1, Cr)
    b2 = b2_ref[...].astype(jnp.float32)                           # (1, Cr)
    b3 = b3_ref[...].astype(jnp.float32)                           # (1, C)

    upper = jnp.maximum(
        jnp.dot(mean, w1t, preferred_element_type=jnp.float32) + b1, 0.0)
    lower = jnp.maximum(
        jnp.dot(std, w2t, preferred_element_type=jnp.float32) + b2, 0.0)
    gate = jax.nn.sigmoid(
        jnp.dot(upper + lower, w3t, preferred_element_type=jnp.float32) + b3)  # (TB, C)

    # ---- apply: out = gate * x (multiply in the input dtype) -------------
    o_ref[...] = (gate.astype(x_ref.dtype)[:, :, None] * x_ref[...]).astype(o_ref.dtype)


# --------------------------------------------------------------------------
# Two-pass HW-tiled fallback (one batch slab does not fit VMEM).
# --------------------------------------------------------------------------
def _nca_stats_kernel(x_ref, s1_ref, s2_ref, *, hw, tile_hw, needs_mask):
    t = pl.program_id(1)
    x = x_ref[...].astype(jnp.float32)                             # (1, C, tile_hw)
    if needs_mask:
        col = t * tile_hw + jax.lax.broadcasted_iota(jnp.int32, x.shape, 2)
        x = jnp.where(col < hw, x, 0.0)
    ps1 = jnp.sum(x, axis=-1)                                      # (1, C)
    ps2 = jnp.sum(x * x, axis=-1)                                  # (1, C)

    @pl.when(t == 0)
    def _():
        s1_ref[...] = jnp.zeros_like(s1_ref)
        s2_ref[...] = jnp.zeros_like(s2_ref)

    s1_ref[...] += ps1[:, None, :]
    s2_ref[...] += ps2[:, None, :]


def _nca_apply_kernel(gate_ref, x_ref, o_ref):
    g = gate_ref[...].astype(x_ref.dtype)                          # (1, C, 1)
    o_ref[...] = (g * x_ref[...]).astype(o_ref.dtype)


def _nca_two_pass(x_flat, w1, b1, w2, b2, w3, b3, *, hw, cap, scoped_cap):
    """Pass 1 tiles HW and accumulates sum(x)/sum(x^2); the tiny gate math runs
    as plain JAX; pass 2 tiles HW again and applies gate*x ('parallel' axes so
    a 2-TC part shards the apply pass). Costs 3 HBM passes over x instead of 2.
    """
    B, C, _ = x_flat.shape

    tile_target = (4 << 20) if cap >= (96 << 20) else (2 << 20)
    thw = max(128, (tile_target // (C * 4)) // 128 * 128)
    thw = min(thw, _round_up(hw, 128))
    nt = -(-hw // thw)
    needs_mask = (hw % thw) != 0

    vmem_limit = int(min(max(8 * C * thw * 4 + (4 << 20), 32 << 20), scoped_cap))

    s1, s2 = pl.pallas_call(
        functools.partial(_nca_stats_kernel, hw=hw, tile_hw=thw,
                          needs_mask=needs_mask),
        out_shape=(jax.ShapeDtypeStruct((B, 1, C), jnp.float32),
                   jax.ShapeDtypeStruct((B, 1, C), jnp.float32)),
        grid_spec=pltpu.PrefetchScalarGridSpec(
            num_scalar_prefetch=0,
            grid=(B, nt),
            in_specs=[pl.BlockSpec((1, C, thw), lambda b, t: (b, 0, t))],
            out_specs=(pl.BlockSpec((1, 1, C), lambda b, t: (b, 0, 0)),
                       pl.BlockSpec((1, 1, C), lambda b, t: (b, 0, 0))),
        ),
        compiler_params=pltpu.CompilerParams(
            dimension_semantics=("parallel", "arbitrary"),
            vmem_limit_bytes=vmem_limit,
        ),
    )(x_flat)

    inv_hw = 1.0 / float(hw)
    mean = s1[:, 0, :] * inv_hw                                    # (B, C)
    # NOTE: E[x^2]-mean^2 (clamped) can lose precision vs the centered formula
    # when |mean| >> std; acceptable for the fallback path.
    var = jnp.maximum(s2[:, 0, :] * inv_hw - mean * mean, 0.0)
    std = jnp.sqrt(var)
    upper = jnp.maximum(mean @ w1.T + b1, 0.0)
    lower = jnp.maximum(std @ w2.T + b2, 0.0)
    gate = jax.nn.sigmoid((upper + lower) @ w3.T + b3)             # (B, C) f32
    gate3 = gate[:, :, None]                                       # (B, C, 1)

    # TODO(synk): for B == 1 on 2-TC parts, also split pass 1's HW reduction
    # across cores (per-core partial sums) so the stats pass is not single-core.
    out_flat = pl.pallas_call(
        _nca_apply_kernel,
        out_shape=jax.ShapeDtypeStruct(x_flat.shape, x_flat.dtype),
        grid_spec=pltpu.PrefetchScalarGridSpec(
            num_scalar_prefetch=0,
            grid=(B, nt),
            in_specs=[pl.BlockSpec((1, C, 1), lambda b, t: (b, 0, 0)),
                      pl.BlockSpec((1, C, thw), lambda b, t: (b, 0, t))],
            out_specs=pl.BlockSpec((1, C, thw), lambda b, t: (b, 0, t)),
        ),
        compiler_params=pltpu.CompilerParams(
            dimension_semantics=("parallel", "parallel"),
            vmem_limit_bytes=vmem_limit,
        ),
    )(gate3, x_flat)
    return out_flat


# --------------------------------------------------------------------------
# Public wrapper.
# --------------------------------------------------------------------------
def nca_forward(x, w1, b1, w2, b2, w3, b3, *, force_two_pass=False):
    """x: (B, C, H, W).  w1, w2: (Cr, C); w3: (C, Cr); biases 1-D."""
    B, C, H, W = x.shape
    HW = H * W
    Cr = w1.shape[0]
    itemsize = jnp.dtype(x.dtype).itemsize

    cap, cores = _tpu_params()
    scoped_cap = int(cap * 3 // 4)      # never request full physical VMEM

    # NCHW -> (B, C, HW): metadata-only reshape of a contiguous array (no pad
    # copy, no output slice -> no extra HBM passes).
    x_flat = x.reshape(B, C, HW)

    weight_bytes = (2 * C * Cr + Cr * C + 2 * Cr + C) * 4
    per_batch_in = C * HW * itemsize
    per_batch_f32 = C * HW * 4

    # Footprint model: 2x double-buffered input + output blocks plus ~3
    # block-sized f32 intermediates (centered diff etc.) plus weights + slack.
    def footprint(tb):
        return (4 * tb * per_batch_in + 3 * tb * per_batch_f32
                + 2 * weight_bytes + (4 << 20))

    if force_two_pass or footprint(1) > scoped_cap:
        out_flat = _nca_two_pass(x_flat, w1, b1, w2, b2, w3, b3,
                                 hw=HW, cap=cap, scoped_cap=scoped_cap)
        return out_flat.reshape(B, C, H, W)

    # ---- single-pass path --------------------------------------------------
    target_block = (8 << 20) if cap >= (96 << 20) else (4 << 20)
    divs = [d for d in range(B, 0, -1) if B % d == 0]      # descending divisors
    TB = next((d for d in divs
               if d * per_batch_in <= target_block and footprint(d) <= scoped_cap),
              1)
    # Only force >=2 grid steps on 2-TC parts (v7x); on single-TC parts bigger
    # blocks win.  (B == 1 on 2-TC parts stays single-core here.)
    if cores >= 2 and B >= 2 and (B // TB) < 2:
        TB = next(d for d in divs if d <= B // 2)
    grid = B // TB

    vmem_limit = int(min(max(footprint(TB), 32 << 20), scoped_cap))

    # Pre-transpose conv weights so the contraction axis is the dot axis.
    w1t = w1.T                      # (C, Cr)
    w2t = w2.T                      # (C, Cr)
    w3t = w3.T                      # (Cr, C)
    b1_2d = b1.reshape(1, Cr)
    b2_2d = b2.reshape(1, Cr)
    b3_2d = b3.reshape(1, C)

    def full_spec(shape):
        n = len(shape)
        return pl.BlockSpec(shape, lambda b: (0,) * n)

    cost = pl.CostEstimate(
        flops=int(4 * B * C * HW + 6 * B * C * Cr),
        transcendentals=int(2 * B * C),
        bytes_accessed=int(2 * B * C * HW * itemsize + weight_bytes),
    )

    kernel = functools.partial(_nca_kernel, inv_hw=1.0 / float(HW))

    out_flat = pl.pallas_call(
        kernel,
        out_shape=jax.ShapeDtypeStruct((B, C, HW), x.dtype),
        grid_spec=pltpu.PrefetchScalarGridSpec(
            num_scalar_prefetch=0,
            grid=(grid,),
            in_specs=[
                pl.BlockSpec((TB, C, HW), lambda b: (b, 0, 0)),   # x
                full_spec((C, Cr)),                               # w1^T
                full_spec((1, Cr)),                               # b1
                full_spec((C, Cr)),                               # w2^T
                full_spec((1, Cr)),                               # b2
                full_spec((Cr, C)),                               # w3^T
                full_spec((1, C)),                                # b3
            ],
            out_specs=pl.BlockSpec((TB, C, HW), lambda b: (b, 0, 0)),
        ),
        compiler_params=pltpu.CompilerParams(
            dimension_semantics=("parallel",),
            vmem_limit_bytes=vmem_limit,
        ),
        cost_estimate=cost,
        # TODO(synk): expose input_output_aliases={0: 0} when the caller can
        # donate x (no bandwidth change, but halves activation HBM footprint).
    )(x_flat, w1t, b1_2d, w2t, b2_2d, w3t, b3_2d)

    return out_flat.reshape(B, C, H, W)


# --------------------------------------------------------------------------
# Pure-JAX reference reproducing the PyTorch module exactly.
# --------------------------------------------------------------------------
def nca_reference(x, w1, b1, w2, b2, w3, b3):
    mean = jnp.mean(x, axis=(2, 3), keepdims=True)                 # (B,C,1,1)
    var = jnp.mean((x - mean) ** 2, axis=(2, 3), keepdims=True)
    std = jnp.sqrt(var)                                            # (B,C,1,1)

    m = mean[..., 0, 0]                                            # (B,C)
    s = std[..., 0, 0]                                             # (B,C)
    upper = jnp.maximum(m @ w1.T + b1, 0.0)                        # (B,Cr)
    lower = jnp.maximum(s @ w2.T + b2, 0.0)                        # (B,Cr)
    gate = jax.nn.sigmoid((upper + lower) @ w3.T + b3)             # (B,C)
    return gate[:, :, None, None] * x


if __name__ == "__main__":
    B, n_feats, reduction = 2, 16, 4
    H = W = 16
    Cr = n_feats // reduction

    key = jax.random.PRNGKey(0)
    kx, k1, k2, k3, k4, k5, k6 = jax.random.split(key, 7)

    x = jax.random.normal(kx, (B, n_feats, H, W), dtype=jnp.float32)

    # Deterministic synthetic parameters (1x1 conv weights squeezed to 2-D).
    w1 = jax.random.normal(k1, (Cr, n_feats), dtype=jnp.float32) * 0.1
    b1 = jax.random.normal(k2, (Cr,), dtype=jnp.float32) * 0.05
    w2 = jax.random.normal(k3, (Cr, n_feats), dtype=jnp.float32) * 0.1
    b2 = jax.random.normal(k4, (Cr,), dtype=jnp.float32) * 0.05
    w3 = jax.random.normal(k5, (n_feats, Cr), dtype=jnp.float32) * 0.1
    b3 = jax.random.normal(k6, (n_feats,), dtype=jnp.float32) * 0.05

    ref = nca_reference(x, w1, b1, w2, b2, w3, b3)

    # Primary single-pass kernel.
    out = jax.block_until_ready(nca_forward(x, w1, b1, w2, b2, w3, b3))
    assert out.shape == (B, n_feats, H, W)
    assert jnp.allclose(out, ref, atol=1e-4, rtol=1e-4), "single-pass mismatch"

    # Also exercise the two-pass HW-tiled fallback (used for huge C*HW slabs).
    out2 = jax.block_until_ready(
        nca_forward(x, w1, b1, w2, b2, w3, b3, force_two_pass=True))
    assert jnp.allclose(out2, ref, atol=1e-4, rtol=1e-4), "two-pass mismatch"

    print("KERNEL_OK")
</pallas_src>

<mosaic_0001>
module attributes {stable_mosaic.version = 11 : i64} {
  func.func @_nca_kernel(%arg0: i32, %arg1: memref<2x16x256xf32, #tpu.memory_space<vmem>>, %arg2: memref<16x4xf32, #tpu.memory_space<vmem>>, %arg3: memref<1x4xf32, #tpu.memory_space<vmem>>, %arg4: memref<16x4xf32, #tpu.memory_space<vmem>>, %arg5: memref<1x4xf32, #tpu.memory_space<vmem>>, %arg6: memref<4x16xf32, #tpu.memory_space<vmem>>, %arg7: memref<1x16xf32, #tpu.memory_space<vmem>>, %arg8: memref<2x16x256xf32, #tpu.memory_space<vmem>>) attributes {dimension_semantics = [#tpu.dimension_semantics<parallel>], iteration_bounds = array<i64: 1>, scalar_prefetch = 0 : i64, scratch_operands = 0 : i64, tpu.core_type = #tpu.core_type<tc>, window_params = [{transform_indices = @transform_0, window_bounds = array<i64: 2, 16, 256>}, {pipeline_mode = #tpu.pipeline_mode<synchronous>, transform_indices = @transform_1, window_bounds = array<i64: 16, 4>}, {pipeline_mode = #tpu.pipeline_mode<synchronous>, transform_indices = @transform_2, window_bounds = array<i64: 1, 4>}, {pipeline_mode = #tpu.pipeline_mode<synchronous>, transform_indices = @transform_3, window_bounds = array<i64: 16, 4>}, {pipeline_mode = #tpu.pipeline_mode<synchronous>, transform_indices = @transform_4, window_bounds = array<i64: 1, 4>}, {pipeline_mode = #tpu.pipeline_mode<synchronous>, transform_indices = @transform_5, window_bounds = array<i64: 4, 16>}, {pipeline_mode = #tpu.pipeline_mode<synchronous>, transform_indices = @transform_6, window_bounds = array<i64: 1, 16>}, {transform_indices = @transform_7, window_bounds = array<i64: 2, 16, 256>}]} {
    %c0 = arith.constant 0 : index
    %c0_0 = arith.constant 0 : index
    %c0_1 = arith.constant 0 : index
    %0 = vector.load %arg1[%c0, %c0_0, %c0_1] : memref<2x16x256xf32, #tpu.memory_space<vmem>>, vector<2x16x256xf32>
    %cst = arith.constant dense<0.000000e+00> : vector<2x16xf32>
    %1 = vector.multi_reduction <add>, %0, %cst [2] : vector<2x16x256xf32> to vector<2x16xf32>
    %cst_2 = arith.constant 3.906250e-03 : f32
    %2 = vector.broadcast %cst_2 : f32 to vector<2x16xf32>
    %3 = arith.mulf %1, %2 : vector<2x16xf32>
    %c0_3 = arith.constant 0 : index
    %c0_4 = arith.constant 0 : index
    %c0_5 = arith.constant 0 : index
    %4 = vector.load %arg1[%c0_3, %c0_4, %c0_5] : memref<2x16x256xf32, #tpu.memory_space<vmem>>, vector<2x16x256xf32>
    %5 = vector.shape_cast %3 : vector<2x16xf32> to vector<2x16x1xf32>
    %6 = vector.broadcast %5 : vector<2x16x1xf32> to vector<2x16x256xf32>
    %7 = arith.subf %4, %6 : vector<2x16x256xf32>
    %8 = arith.mulf %7, %7 : vector<2x16x256xf32>
    %cst_6 = arith.constant dense<0.000000e+00> : vector<2x16xf32>
    %9 = vector.multi_reduction <add>, %8, %cst_6 [2] : vector<2x16x256xf32> to vector<2x16xf32>
    %cst_7 = arith.constant 3.906250e-03 : f32
    %10 = vector.broadcast %cst_7 : f32 to vector<2x16xf32>
    %11 = arith.mulf %9, %10 : vector<2x16xf32>
    %12 = math.sqrt %11 : vector<2x16xf32>
    %c0_8 = arith.constant 0 : index
    %c0_9 = arith.constant 0 : index
    %13 = vector.load %arg2[%c0_8, %c0_9] : memref<16x4xf32, #tpu.memory_space<vmem>>, vector<16x4xf32>
    %c0_10 = arith.constant 0 : index
    %c0_11 = arith.constant 0 : index
    %14 = vector.load %arg4[%c0_10, %c0_11] : memref<16x4xf32, #tpu.memory_space<vmem>>, vector<16x4xf32>
    %c0_12 = arith.constant 0 : index
    %c0_13 = arith.constant 0 : index
    %15 = vector.load %arg6[%c0_12, %c0_13] : memref<4x16xf32, #tpu.memory_space<vmem>>, vector<4x16xf32>
    %c0_14 = arith.constant 0 : index
    %c0_15 = arith.constant 0 : index
    %16 = vector.load %arg3[%c0_14, %c0_15] : memref<1x4xf32, #tpu.memory_space<vmem>>, vector<1x4xf32>
    %c0_16 = arith.constant 0 : index
    %c0_17 = arith.constant 0 : index
    %17 = vector.load %arg5[%c0_16, %c0_17] : memref<1x4xf32, #tpu.memory_space<vmem>>, vector<1x4xf32>
    %c0_18 = arith.constant 0 : index
    %c0_19 = arith.constant 0 : index
    %18 = vector.load %arg7[%c0_18, %c0_19] : memref<1x16xf32, #tpu.memory_space<vmem>>, vector<1x16xf32>
    %cst_20 = arith.constant dense<0.000000e+00> : vector<2x4xf32>
    %19 = tpu.matmul %3, %13, %cst_20 {dimension_numbers = #tpu.dot_dimension_numbers<[1], [0], [0], [1], [0, 0, 1, 1], [], []>} : vector<2x16xf32>, vector<16x4xf32>, vector<2x4xf32> -> vector<2x4xf32>
    %20 = vector.broadcast %16 : vector<1x4xf32> to vector<2x4xf32>
    %21 = arith.addf %19, %20 : vector<2x4xf32>
    %cst_21 = arith.constant 0.000000e+00 : f32
    %22 = vector.broadcast %cst_21 : f32 to vector<2x4xf32>
    %23 = arith.maximumf %21, %22 : vector<2x4xf32>
    %cst_22 = arith.constant dense<0.000000e+00> : vector<2x4xf32>
    %24 = tpu.matmul %12, %14, %cst_22 {dimension_numbers = #tpu.dot_dimension_numbers<[1], [0], [0], [1], [0, 0, 1, 1], [], []>} : vector<2x16xf32>, vector<16x4xf32>, vector<2x4xf32> -> vector<2x4xf32>
    %25 = vector.broadcast %17 : vector<1x4xf32> to vector<2x4xf32>
    %26 = arith.addf %24, %25 : vector<2x4xf32>
    %cst_23 = arith.constant 0.000000e+00 : f32
    %27 = vector.broadcast %cst_23 : f32 to vector<2x4xf32>
    %28 = arith.maximumf %26, %27 : vector<2x4xf32>
    %29 = arith.addf %23, %28 : vector<2x4xf32>
    %cst_24 = arith.constant dense<0.000000e+00> : vector<2x16xf32>
    %30 = tpu.matmul %29, %15, %cst_24 {dimension_numbers = #tpu.dot_dimension_numbers<[1], [0], [0], [1], [0, 0, 1, 1], [], []>} : vector<2x4xf32>, vector<4x16xf32>, vector<2x16xf32> -> vector<2x16xf32>
    %31 = vector.broadcast %18 : vector<1x16xf32> to vector<2x16xf32>
    %32 = arith.addf %30, %31 : vector<2x16xf32>
    %33 = arith.negf %32 : vector<2x16xf32>
    %34 = math.exp %33 : vector<2x16xf32>
    %cst_25 = arith.constant 1.000000e+00 : f32
    %35 = vector.broadcast %cst_25 : f32 to vector<2x16xf32>
    %36 = arith.addf %35, %34 : vector<2x16xf32>
    %37 = arith.divf %35, %36 : vector<2x16xf32>
    %38 = vector.shape_cast %37 : vector<2x16xf32> to vector<2x16x1xf32>
    %c0_26 = arith.constant 0 : index
    %c0_27 = arith.constant 0 : index
    %c0_28 = arith.constant 0 : index
    %39 = vector.load %arg1[%c0_26, %c0_27, %c0_28] : memref<2x16x256xf32, #tpu.memory_space<vmem>>, vector<2x16x256xf32>
    %40 = vector.broadcast %38 : vector<2x16x1xf32> to vector<2x16x256xf32>
    %41 = arith.mulf %40, %39 : vector<2x16x256xf32>
    %c0_29 = arith.constant 0 : index
    %c0_30 = arith.constant 0 : index
    %c0_31 = arith.constant 0 : index
    %42 = vector.load %arg8[%c0_29, %c0_30, %c0_31] : memref<2x16x256xf32, #tpu.memory_space<vmem>>, vector<2x16x256xf32>
    tpu.vector_store %arg8[%c0_29, %c0_30, %c0_31], %41 {strides = array<i32>} : memref<2x16x256xf32, #tpu.memory_space<vmem>>, vector<2x16x256xf32>,
    return
  }
  func.func @transform_0(%arg0: i32) -> (i32, i32, i32) {
    %c0_i32 = arith.constant 0 : i32
    %c0_i32_0 = arith.constant 0 : i32
    %c0_i32_1 = arith.constant 0 : i32
    return %arg0, %c0_i32, %c0_i32_0 : i32, i32, i32
  }
  func.func @transform_1(%arg0: i32) -> (i32, i32) {
    %c0_i32 = arith.constant 0 : i32
    %c0_i32_0 = arith.constant 0 : i32
    %c0_i32_1 = arith.constant 0 : i32
    return %c0_i32, %c0_i32_0 : i32, i32
  }
  func.func @transform_2(%arg0: i32) -> (i32, i32) {
    %c0_i32 = arith.constant 0 : i32
    %c0_i32_0 = arith.constant 0 : i32
    %c0_i32_1 = arith.constant 0 : i32
    return %c0_i32, %c0_i32_0 : i32, i32
  }
  func.func @transform_3(%arg0: i32) -> (i32, i32) {
    %c0_i32 = arith.constant 0 : i32
    %c0_i32_0 = arith.constant 0 : i32
    %c0_i32_1 = arith.constant 0 : i32
    return %c0_i32, %c0_i32_0 : i32, i32
  }
  func.func @transform_4(%arg0: i32) -> (i32, i32) {
    %c0_i32 = arith.constant 0 : i32
    %c0_i32_0 = arith.constant 0 : i32
    %c0_i32_1 = arith.constant 0 : i32
    return %c0_i32, %c0_i32_0 : i32, i32
  }
  func.func @transform_5(%arg0: i32) -> (i32, i32) {
    %c0_i32 = arith.constant 0 : i32
    %c0_i32_0 = arith.constant 0 : i32
    %c0_i32_1 = arith.constant 0 : i32
    return %c0_i32, %c0_i32_0 : i32, i32
  }
  func.func @transform_6(%arg0: i32) -> (i32, i32) {
    %c0_i32 = arith.constant 0 : i32
    %c0_i32_0 = arith.constant 0 : i32
    %c0_i32_1 = arith.constant 0 : i32
    return %c0_i32, %c0_i32_0 : i32, i32
  }
  func.func @transform_7(%arg0: i32) -> (i32, i32, i32) {
    %c0_i32 = arith.constant 0 : i32
    %c0_i32_0 = arith.constant 0 : i32
    %c0_i32_1 = arith.constant 0 : i32
    return %arg0, %c0_i32, %c0_i32_0 : i32, i32, i32
  }
}

</mosaic_0001>

<llo_original>
// kernel: tpu_custom_call.1
$region0: #{tpu_custom_call.1}
  #allocation0 [shape = 'u32[]', space=smem, size = 0x4, offset = 0x4, fixed_abs, tag = 'smem constant byte address 0x4 - core index']
  #allocation1 [shape = 'u32[72,128]{1,0:T(1,128)}', space=vmem, size = 0x9000, scoped, tag = 'internal scratch']
  %s0 = inlined_call_operand.hbm [shape: f32[2,16,256], index: 0, kind: input, shape index: {}]
  %s1 = inlined_call_operand.vmem [shape: f32[16,4], index: 1, kind: input, shape index: {}]
  %s2 = inlined_call_operand.vmem [shape: f32[1,4], index: 2, kind: input, shape index: {}]
  %s3 = inlined_call_operand.vmem [shape: f32[16,4], index: 3, kind: input, shape index: {}]
  %s4 = inlined_call_operand.vmem [shape: f32[1,4], index: 4, kind: input, shape index: {}]
  %s5 = inlined_call_operand.vmem [shape: f32[4,16], index: 5, kind: input, shape index: {}]
  %s6 = inlined_call_operand.vmem [shape: f32[1,16], index: 6, kind: input, shape index: {}]
  %s7 = inlined_call_operand.hbm [shape: f32[2,16,256], index: 7, kind: output, shape index: {}]
  %s8 = sld [smem:[#allocation0]]
  $region42: #{tpu_custom_call.1} parent=0
    _
  %s10 = ssub.s32 1, %s8
  %s11 = scalar_select 0, %s10, %s8
  $region1: #{tpu_custom_call.1} parent=0
    #allocation2 [shape = 'u8[32768]{0}', space=vmem, size = 0x8000, scoped, tag = 'input window, operand 0, single buffered']
    #allocation3 [shape = 's32[1]{0}', space=sflag, size = 0x4, scoped, tag = 'scoped memory for tpu_custom_call.1']
    #allocation4 [shape = 's32[1]{0}', space=sflag, size = 0x4, scoped, tag = 'scoped memory for tpu_custom_call.1']
    #allocation5 [shape = 'u8[32768]{0}', space=vmem, size = 0x8000, scoped, tag = 'output window, operand 0, single buffered']
    %12 = vsyncpa [#allocation3], 0
    %13 = vsyncpa [#allocation4], 0
    // Predicated region
    $region2: #{tpu_custom_call.1} parent=1 // pred_check
      _
    $region3: #{tpu_custom_call.1} parent=1 // pred_check_branch
      %15 = sbr.rel (0) target = $region5
    $region4: #{tpu_custom_call.1} parent=1 // pred_region
      %17 = vsyncadd [#allocation3], 0
      %s18 = sshll.u32 %s0, 4
      %s19 = int_to_ptr.hbm [resolvable:$true] %s18
      %s20 = sshll.u32 [#allocation2], 4
      %s21 = int_to_ptr.vmem [resolvable:$true] %s20
      %26 = dma.hbm_to_vmem [thread:$0]  %s19, 1024, %s21, [#allocation3], 256, 256, 16
    $region5: #{tpu_custom_call.1} parent=1 // pred_fallthru
      _
    // Predicated region
    $region6: #{tpu_custom_call.1} parent=1 // pred_check
      _
    $region7: #{tpu_custom_call.1} parent=1 // pred_check_branch
      %28 = sbr.rel (0) target = $region9
    $region8: #{tpu_custom_call.1} parent=1 // pred_region
      _
    $region9: #{tpu_custom_call.1} parent=1 // pred_fallthru
      _
    // Predicated region
    $region10: #{tpu_custom_call.1} parent=1 // pred_check
      _
    $region11: #{tpu_custom_call.1} parent=1 // pred_check_branch
      %30 = sbr.rel (0) target = $region13
    $region12: #{tpu_custom_call.1} parent=1 // pred_region
      _
    $region13: #{tpu_custom_call.1} parent=1 // pred_fallthru
      _
    // Predicated region
    $region14: #{tpu_custom_call.1} parent=1 // pred_check
      _
    $region15: #{tpu_custom_call.1} parent=1 // pred_check_branch
      %32 = sbr.rel (0) target = $region17
    $region16: #{tpu_custom_call.1} parent=1 // pred_region
      _
    $region17: #{tpu_custom_call.1} parent=1 // pred_fallthru
      _
    // Predicated region
    $region18: #{tpu_custom_call.1} parent=1 // pred_check
      _
    $region19: #{tpu_custom_call.1} parent=1 // pred_check_branch
      %34 = sbr.rel (0) target = $region21
    $region20: #{tpu_custom_call.1} parent=1 // pred_region
      _
    $region21: #{tpu_custom_call.1} parent=1 // pred_fallthru
      _
    // Predicated region
    $region22: #{tpu_custom_call.1} parent=1 // pred_check
      _
    $region23: #{tpu_custom_call.1} parent=1 // pred_check_branch
      %36 = sbr.rel (0) target = $region25
    $region24: #{tpu_custom_call.1} parent=1 // pred_region
      _
    $region25: #{tpu_custom_call.1} parent=1 // pred_fallthru
      _
    // Predicated region
    $region26: #{tpu_custom_call.1} parent=1 // pred_check
      _
    $region27: #{tpu_custom_call.1} parent=1 // pred_check_branch
      %38 = sbr.rel (0) target = $region29
    $region28: #{tpu_custom_call.1} parent=1 // pred_region
      _
    $region29: #{tpu_custom_call.1} parent=1 // pred_fallthru
      _
    // Predicated region
    $region30: #{tpu_custom_call.1} parent=1 // pred_check
      _
    $region31: #{tpu_custom_call.1} parent=1 // pred_check_branch
      %40 = sbr.rel (0) target = $region33
    $region32: #{tpu_custom_call.1} parent=1 // pred_region
      %42 = dma.done [#allocation3], 1024
    $region33: #{tpu_custom_call.1} parent=1 // pred_fallthru
      _
    %v43 = vld [vmem:[#allocation2] sm:$0xff]
    %v44 = vld [vmem:[#allocation2 + $0x8] sm:$0xff]
    %v45 = vld [vmem:[#allocation2 + $0x10] sm:$0xff]
    %v46 = vld [vmem:[#allocation2 + $0x18] sm:$0xff]
    %v47 = vld [vmem:[#allocation2 + $0x20] sm:$0xff]
    %v48 = vld [vmem:[#allocation2 + $0x28] sm:$0xff]
    %v49 = vld [vmem:[#allocation2 + $0x30] sm:$0xff]
    %v50 = vld [vmem:[#allocation2 + $0x38] sm:$0xff]
    %v51 = vadd.f32 %v43, %v44
    %52 = vadd.xlane.f32.xlu0 %v51
    %v53 = vpop.xlane.xlu0 %52
    %v54 = vadd.f32 %v45, %v46
    %55 = vadd.xlane.f32.xlu0 %v54
    %v56 = vpop.xlane.xlu0 %55
    %v57 = vadd.f32 %v47, %v48
    %58 = vadd.xlane.f32.xlu0 %v57
    %v59 = vpop.xlane.xlu0 %58
    %v60 = vadd.f32 %v49, %v50
    %61 = vadd.xlane.f32.xlu0 %v60
    %v62 = vpop.xlane.xlu0 %61
    %v63 = vmul.f32 %v53, 0.00390625
    %v64 = vmul.f32 %v56, 0.00390625
    %v65 = vmul.f32 %v59, 0.00390625
    %v66 = vmul.f32 %v62, 0.00390625
    %v67 = vsub.f32 %v43, %v63
    %v68 = vsub.f32 %v44, %v63
    %v69 = vsub.f32 %v45, %v64
    %v70 = vsub.f32 %v46, %v64
    %v71 = vsub.f32 %v47, %v65
    %v72 = vsub.f32 %v48, %v65
    %v73 = vsub.f32 %v49, %v66
    %v74 = vsub.f32 %v50, %v66
    %v75 = vmul.f32 %v67, %v67
    %v76 = vmul.f32 %v68, %v68
    %v77 = vmul.f32 %v69, %v69
    %v78 = vmul.f32 %v70, %v70
    %v79 = vmul.f32 %v71, %v71
    %v80 = vmul.f32 %v72, %v72
    %v81 = vmul.f32 %v73, %v73
    %v82 = vmul.f32 %v74, %v74
    %v83 = vadd.f32 %v75, %v76
    %84 = vadd.xlane.f32.xlu0 %v83
    %v85 = vpop.xlane.xlu0 %84
    %v86 = vadd.f32 %v77, %v78
    %87 = vadd.xlane.f32.xlu0 %v86
    %v88 = vpop.xlane.xlu0 %87
    %v89 = vadd.f32 %v79, %v80
    %90 = vadd.xlane.f32.xlu0 %v89
    %v91 = vpop.xlane.xlu0 %90
    %v92 = vadd.f32 %v81, %v82
    %93 = vadd.xlane.f32.xlu0 %v92
    %v94 = vpop.xlane.xlu0 %93
    %v95 = vmul.f32 %v85, 0.00390625
    %v96 = vmul.f32 %v88, 0.00390625
    %v97 = vmul.f32 %v91, 0.00390625
    %v98 = vmul.f32 %v94, 0.00390625
    %v99 = vrsqrt.pop %v95
    %v100 = vmul.f32 %v99, %v95
    %v101 = vmul.f32 %v100, %v99
    %v102 = vmul.f32 0.5, %v101
    %v103 = vsub.f32 1.5, %v102
    %v104 = vmul.f32 %v99, %v103
    %v105 = vmul.f32 %v95, %v104
    %vm106 = vcmp.eq.f32.partialorder %v95, inf
    %v107 = vsel %vm106, %v95, %v105
    %vm108 = vcmp.eq.f32.partialorder %v95, 0.0
    %v109 = vand.u32 %v95, 2147483648
    %v110 = vsel %vm108, %v109, %v107
    %v111 = vrsqrt.pop %v96
    %v112 = vmul.f32 %v111, %v96
    %v113 = vmul.f32 %v112, %v111
    %v114 = vmul.f32 0.5, %v113
    %v115 = vsub.f32 1.5, %v114
    %v116 = vmul.f32 %v111, %v115
    %v117 = vmul.f32 %v96, %v116
    %vm118 = vcmp.eq.f32.partialorder %v96, inf
    %v119 = vsel %vm118, %v96, %v117
    %vm120 = vcmp.eq.f32.partialorder %v96, 0.0
    %v121 = vand.u32 %v96, 2147483648
    %v122 = vsel %vm120, %v121, %v119
    %v123 = vrsqrt.pop %v97
    %v124 = vmul.f32 %v123, %v97
    %v125 = vmul.f32 %v124, %v123
    %v126 = vmul.f32 0.5, %v125
    %v127 = vsub.f32 1.5, %v126
    %v128 = vmul.f32 %v123, %v127
    %v129 = vmul.f32 %v97, %v128
    %vm130 = vcmp.eq.f32.partialorder %v97, inf
    %v131 = vsel %vm130, %v97, %v129
    %vm132 = vcmp.eq.f32.partialorder %v97, 0.0
    %v133 = vand.u32 %v97, 2147483648
    %v134 = vsel %vm132, %v133, %v131
    %v135 = vrsqrt.pop %v98
    %v136 = vmul.f32 %v135, %v98
    %v137 = vmul.f32 %v136, %v135
    %v138 = vmul.f32 0.5, %v137
    %v139 = vsub.f32 1.5, %v138
    %v140 = vmul.f32 %v135, %v139
    %v141 = vmul.f32 %v98, %v140
    %vm142 = vcmp.eq.f32.partialorder %v98, inf
    %v143 = vsel %vm142, %v98, %v141
    %vm144 = vcmp.eq.f32.partialorder %v98, 0.0
    %v145 = vand.u32 %v98, 2147483648
    %v146 = vsel %vm144, %v145, %v143
    %v147 = vld [vmem:[%s1] sm:$0xff]
    %v148 = vld [vmem:[%s1 + $0x8] sm:$0xff]
    %v149 = vld [vmem:[%s3] sm:$0xff]
    %v150 = vld [vmem:[%s3 + $0x8] sm:$0xff]
    %v151 = vld [vmem:[%s5] sm:$0xf]
    %v152 = vld [vmem:[%s2] sm:$0x1]
    %v153 = vld [vmem:[%s4] sm:$0x1]
    %v154 = vld [vmem:[%s6] sm:$0x1]
    %v156 = vperm.slane %v152, 0
    %v162 = vlaneseq
    %v163 = vand.u32 %v162, 127
    %v164 = vperm.slane %v63, %v163
    %v165 = vadd.s32 %v163, 4294967288
    %v166 = vperm.slane %v64, %v165
    %vm167 = vcmask 130112
    %v168 = vsel %vm167, %v166, %v164
    %v169 = vperm.slane %v65, %v163
    %v170 = vperm.slane %v66, %v165
    %v171 = vsel %vm167, %v170, %v169
    %vm172 = vcmask 1041409
    %v173 = vsel %vm172, %v171, %v168
    %vm174 = vcmask 130048
    %v175 = vsel %vm174, %v173, 0
    %177 = vmatpush.msra.mxu0 0.0
    %178 = vmatpush.msra.mxu0 0.0
    %179 = vmatpush.msra.mxu0 0.0
    %180 = vmatpush.msra.mxu0 0.0
    %181 = vmatpush.msra.mxu0 0.0
    %182 = vmatpush.msra.mxu0 0.0
    %183 = vmatpush.msra.mxu0 0.0
    %184 = vmatpush.msra.mxu0 0.0
    %185 = vmatpush.msra.mxu0 0.0
    %186 = vmatpush.msra.mxu0 0.0
    %187 = vmatpush.msra.mxu0 0.0
    %188 = vmatpush.msra.mxu0 0.0
    %189 = vmatpush.msra.mxu0 0.0
    %190 = vmatpush.msra.mxu0 0.0
    %191 = vmatpush.msra.mxu0 %v148
    %192 = vmatpush.msra.mxu0 %v147
    %193 = vmatmul.f32.gmra.mxu0 %v175
    %v194 = vpop.f32.mrf.mxu0
    %v195 = vadd.f32 %v156, %v194
    %196 = vdwg.mxu0
    %v197 = vmax.f32 %v195, 0.0
    %v199 = vperm.slane %v153, 0
    %v205 = vperm.slane %v110, %v163
    %v206 = vperm.slane %v122, %v165
    %v207 = vsel %vm167, %v206, %v205
    %v208 = vperm.slane %v134, %v163
    %v209 = vperm.slane %v146, %v165
    %v210 = vsel %vm167, %v209, %v208
    %v211 = vsel %vm172, %v210, %v207
    %v212 = vsel %vm174, %v211, 0
    %214 = vmatpush.msra.mxu0 0.0
    %215 = vmatpush.msra.mxu0 0.0
    %216 = vmatpush.msra.mxu0 0.0
    %217 = vmatpush.msra.mxu0 0.0
    %218 = vmatpush.msra.mxu0 0.0
    %219 = vmatpush.msra.mxu0 0.0
    %220 = vmatpush.msra.mxu0 0.0
    %221 = vmatpush.msra.mxu0 0.0
    %222 = vmatpush.msra.mxu0 0.0
    %223 = vmatpush.msra.mxu0 0.0
    %224 = vmatpush.msra.mxu0 0.0
    %225 = vmatpush.msra.mxu0 0.0
    %226 = vmatpush.msra.mxu0 0.0
    %227 = vmatpush.msra.mxu0 0.0
    %228 = vmatpush.msra.mxu0 %v150
    %229 = vmatpush.msra.mxu0 %v149
    %230 = vmatmul.f32.gmra.mxu0 %v212
    %v231 = vpop.f32.mrf.mxu0
    %v232 = vadd.f32 %v199, %v231
    %233 = vdwg.mxu0
    %v234 = vmax.f32 %v232, 0.0
    %v235 = vadd.f32 %v197, %v234
    %v237 = vperm.slane %v154, 0
    %vm239 = vcmask 31744
    %v241 = vsel %vm239, %v235, 0
    %vm243 = vcmask 1043456
    %v245 = vsel %vm243, %v151, 0
    %247 = vmatpush.msra.mxu0 0.0
    %248 = vmatpush.msra.mxu0 0.0
    %249 = vmatpush.msra.mxu0 0.0
    %250 = vmatpush.msra.mxu0 0.0
    %251 = vmatpush.msra.mxu0 0.0
    %252 = vmatpush.msra.mxu0 0.0
    %253 = vmatpush.msra.mxu0 0.0
    %254 = vmatpush.msra.mxu0 0.0
    %255 = vmatpush.msra.mxu0 0.0
    %256 = vmatpush.msra.mxu0 0.0
    %257 = vmatpush.msra.mxu0 0.0
    %258 = vmatpush.msra.mxu0 0.0
    %259 = vmatpush.msra.mxu0 0.0
    %260 = vmatpush.msra.mxu0 0.0
    %261 = vmatpush.msra.mxu0 0.0
    %262 = vmatpush.msra.mxu0 %v245
    %263 = vmatmul.f32.gmra.mxu0 %v241
    %v264 = vpop.f32.mrf.mxu0
    %v265 = vadd.f32 %v237, %v264
    %266 = vdwg.mxu0
    %v267 = vxor.u32 %v265, 2147483648
    %v268 = vmul.f32 %v267, 1.442695
    %v269 = vpow.pop %v268
    %v270 = vadd.f32 %v269, 1.0
    %v271 = vrcp.pop %v270
    %v272 = vmul.f32 %v270, %v271
    %v273 = vsub.f32 1.0, %v272
    %v274 = vmul.f32 %v271, %v273
    %v275 = vadd.f32 %v271, %v274
    %vm276 = vweird.f32 %v270
    %vm277 = vweird.f32 %v271
    %vm278 = vmor %vm276, %vm277
    %v279 = vsel %vm278, %v271, %v275
    %v280 = vand.u32 2147483647, %v270
    %vm281 = vcmp.eq.f32.partialorder %v280, 8.507059e+37
    %v282 = vand.u32 %v270, 2147483648
    %v283 = vor.u32 1.1754944e-38, %v282
    %v284 = vsel %vm281, %v283, %v279
    %v285 = vmul.f32 1.0, %v284
    %v286 = vperm.slane %v285, 0
    %v287 = vlaneseq
    %v288 = vshrl.u32 %v287, 7
    %290 = vset.pattern.permute.xlu0 %v288
    %291 = vperm.xlu0 %290, %v286
    %v292 = vpop.permute.xlu0 %291
    %v293 = vlaneseq
    %v294 = vshrl.u32 %v293, 7
    %v295 = vadd.s32 %v294, 8
    %296 = vset.pattern.permute.xlu0 %v295
    %297 = vperm.xlu0 %296, %v286
    %v298 = vpop.permute.xlu0 %297
    %v299 = vperm.slane %v285, 1
    %v300 = vlaneseq
    %v301 = vshrl.u32 %v300, 7
    %303 = vset.pattern.permute.xlu0 %v301
    %304 = vperm.xlu0 %303, %v299
    %v305 = vpop.permute.xlu0 %304
    %v306 = vlaneseq
    %v307 = vshrl.u32 %v306, 7
    %v308 = vadd.s32 %v307, 8
    %309 = vset.pattern.permute.xlu0 %v308
    %310 = vperm.xlu0 %309, %v299
    %v311 = vpop.permute.xlu0 %310
    %v312 = vmul.f32 %v292, %v43
    %v313 = vmul.f32 %v292, %v44
    %v314 = vmul.f32 %v298, %v45
    %v315 = vmul.f32 %v298, %v46
    %v316 = vmul.f32 %v305, %v47
    %v317 = vmul.f32 %v305, %v48
    %v318 = vmul.f32 %v311, %v49
    %v319 = vmul.f32 %v311, %v50
    %320 = vst [vmem:[#allocation5] sm:$0xff] %v312
    %321 = vst [vmem:[#allocation5 + $0x8] sm:$0xff] %v313
    %322 = vst [vmem:[#allocation5 + $0x10] sm:$0xff] %v314
    %323 = vst [vmem:[#allocation5 + $0x18] sm:$0xff] %v315
    %324 = vst [vmem:[#allocation5 + $0x20] sm:$0xff] %v316
    %325 = vst [vmem:[#allocation5 + $0x28] sm:$0xff] %v317
    %326 = vst [vmem:[#allocation5 + $0x30] sm:$0xff] %v318
    %327 = vst [vmem:[#allocation5 + $0x38] sm:$0xff] %v319
    // Predicated region
    $region34: #{tpu_custom_call.1} parent=1 // pred_check
      _
    $region35: #{tpu_custom_call.1} parent=1 // pred_check_branch
      %329 = sbr.rel (0) target = $region37
    $region36: #{tpu_custom_call.1} parent=1 // pred_region
      %331 = vsyncadd [#allocation4], 0
      %s332 = sshll.u32 [#allocation5], 4
      %s333 = int_to_ptr.vmem [resolvable:$true] %s332
      %s334 = sshll.u32 %s7, 4
      %s335 = int_to_ptr.hbm [resolvable:$true] %s334
      %340 = dma.vmem_to_hbm [thread:$0]  %s333, 1024, %s335, [#allocation4], 256, 256, 16
    $region37: #{tpu_custom_call.1} parent=1 // pred_fallthru
      _
    // Predicated region
    $region38: #{tpu_custom_call.1} parent=1 // pred_check
      _
    $region39: #{tpu_custom_call.1} parent=1 // pred_check_branch
      %342 = sbr.rel (0) target = $region41
    $region40: #{tpu_custom_call.1} parent=1 // pred_region
      %344 = dma.done [#allocation4], 1024
    $region41: #{tpu_custom_call.1} parent=1 // pred_fallthru
      _
    %345 = vsyncpa [#allocation3], 1
    %346 = vsyncpa [#allocation4], 1

</llo_original>
